<compile_context>
chip_gen: v6e
topology: v6e:2x2x1
jax: 0.10.0
libtpu: 0.0.40
codegen_flags: <defaults>
</compile_context>

<pallas_src>
import math

import jax
import jax.numpy as jnp
from jax.experimental import pallas as pl
from jax.experimental.pallas import tpu as pltpu

# ---------------- model hyper-parameters (small, consistent with the module) ----------------
B = 2           # batch
S = 8           # sequence length (num tokens)
E = 32          # embedding_dimension
H = 4           # n_attention_heads
DK = E // H     # per-head dim
F = 64          # feedforward_dimension
BS = B * S      # flattened token count
LN_EPS = 1e-5   # PyTorch LayerNorm default

# packed-weight layout (bf16 slab). All row offsets are multiples of 16 -> clean bf16 sublane packing.
W_COLS = 2 * E + H * E      # 192 : [Wq*scale | Wk | Wvo_0 .. Wvo_3]
ROW_PROJ = 0                # rows [0, E)        : fused projection  (E, 2E + H*E)
ROW_W1 = E                  # rows [E, 2E)       : W1 (E, F)   (cols 0:F valid)
ROW_W2 = 2 * E              # rows [2E, 2E+F)    : W2 (F, E)   (cols 0:E valid)
W_ROWS = 2 * E + F          # 128

# packed-bias / LN rows (f32 slab, W_COLS wide)
B_PROJ, B_ATTN, B_1, B_2, B_G1, B_BE1, B_G2, B_BE2 = range(8)


def _layer_norm(x, gamma, beta):
    # x: (N, E) f32; gamma/beta: (1, E); biased variance over last dim (PyTorch semantics)
    mean = jnp.mean(x, axis=-1, keepdims=True)
    var = jnp.mean((x - mean) * (x - mean), axis=-1, keepdims=True)
    inv = jax.lax.rsqrt(var + LN_EPS)
    return (x - mean) * inv * gamma + beta


def encoder_block_kernel(x_ref, w_ref, b_ref, mask_ref, out_ref):
    x = x_ref[...].astype(jnp.float32)                            # (BS, E) f32 (residual path)
    x_bf = x.astype(jnp.bfloat16)

    # ---- fused projection: X @ [Wq*scale | Wk | Wvo_h...]  (one bf16 MXU push) ----
    w_proj = w_ref[ROW_PROJ:ROW_PROJ + E, :]                      # (E, 2E+H*E) bf16
    proj = jnp.dot(x_bf, w_proj, preferred_element_type=jnp.float32) \
        + b_ref[B_PROJ:B_PROJ + 1, :]                             # (BS, 192) f32
    proj_bf = proj.astype(jnp.bfloat16)

    # ---- per-head scores (scale already folded into Wq), stacked along sublanes ----
    s_list = []
    for h in range(H):                                            # static unroll, H = 4
        qh = proj_bf[:, h * DK:(h + 1) * DK]                      # (BS, DK) bf16
        kh = proj_bf[:, E + h * DK:E + (h + 1) * DK]              # (BS, DK) bf16
        s_list.append(jax.lax.dot_general(qh, kh, (((1,), (1,)), ((), ())),
                                          preferred_element_type=jnp.float32))  # (BS, BS) f32
    s_all = jnp.concatenate(s_list, axis=0)                       # (H*BS, BS) f32

    # ---- one batched softmax for all heads (mask precomputed host-side, f32) ----
    s_all = s_all + mask_ref[...]                                 # block-diagonal batch mask
    s_all = s_all - jnp.max(s_all, axis=-1, keepdims=True)
    p_all = jnp.exp(s_all)
    p_all = p_all * pl.reciprocal(jnp.sum(p_all, axis=-1, keepdims=True), approx=True)
    p_all = p_all.astype(jnp.bfloat16)

    # ---- P @ V' per head (Wo already folded into V'), accumulated into (BS, E) ----
    acc = jnp.zeros((BS, E), jnp.float32)
    for h in range(H):
        ph = p_all[h * BS:(h + 1) * BS, :]                        # (BS, BS) bf16
        vh = proj_bf[:, 2 * E + h * E:2 * E + (h + 1) * E]        # (BS, E)  bf16 (= X @ Wvo_h)
        acc = acc + jnp.dot(ph, vh, preferred_element_type=jnp.float32)
    attn = acc + b_ref[B_ATTN:B_ATTN + 1, 0:E]                    # bias = bo + bv @ Wo

    # ---- residual + layer norm 1 (dropout p=0.0 -> identity), f32 ----
    y1 = _layer_norm(x + attn, b_ref[B_G1:B_G1 + 1, 0:E], b_ref[B_BE1:B_BE1 + 1, 0:E])

    # ---- feed-forward: Linear -> ReLU -> Linear (bf16 MXU inputs, f32 accumulate) ----
    w1 = w_ref[ROW_W1:ROW_W1 + E, 0:F]                            # (E, F) bf16
    w2 = w_ref[ROW_W2:ROW_W2 + F, 0:E]                            # (F, E) bf16
    hdd = jnp.dot(y1.astype(jnp.bfloat16), w1,
                  preferred_element_type=jnp.float32) + b_ref[B_1:B_1 + 1, 0:F]
    hdd = jnp.maximum(hdd, 0.0)
    ff = jnp.dot(hdd.astype(jnp.bfloat16), w2,
                 preferred_element_type=jnp.float32) + b_ref[B_2:B_2 + 1, 0:E]

    # ---- residual + layer norm 2, f32 ----
    y2 = _layer_norm(y1 + ff, b_ref[B_G2:B_G2 + 1, 0:E], b_ref[B_BE2:B_BE2 + 1, 0:E])

    out_ref[...] = y2.astype(out_ref.dtype)


def pack_params(p):
    """Pack weights into one bf16 (128,192) slab and biases/LN params into one f32 (8,192) slab.

    Folds: 1/sqrt(DK) into Wq/bq; Wo into the V projection (Wvo_h = Wv_h @ Wo_h); bv@Wo into
    the attention bias.
    """
    scale = 1.0 / math.sqrt(DK)
    wq_s = p["wq"] * scale
    bq_s = p["bq"] * scale
    wvo = jnp.concatenate(
        [p["wv"][:, h * DK:(h + 1) * DK] @ p["wo"][h * DK:(h + 1) * DK, :] for h in range(H)],
        axis=1)                                                    # (E, H*E)
    w_proj = jnp.concatenate([wq_s, p["wk"], wvo], axis=1)         # (E, 2E + H*E)

    pad_w = lambda w: jnp.pad(w, ((0, 0), (0, W_COLS - w.shape[1])))
    w_pack = jnp.concatenate([w_proj, pad_w(p["w1"]), pad_w(p["w2"])],
                             axis=0).astype(jnp.bfloat16)          # (128, 192) bf16

    pad_b = lambda b: jnp.pad(b, ((0, 0), (0, W_COLS - b.shape[1])))
    b_proj = jnp.concatenate([bq_s, p["bk"], jnp.zeros((1, H * E), jnp.float32)], axis=1)
    b_attn = p["bo"] + p["bv"] @ p["wo"]                           # bo + bv@Wo (softmax rows sum to 1)
    b_pack = jnp.concatenate(
        [b_proj, pad_b(b_attn), pad_b(p["b1"]), pad_b(p["b2"]),
         pad_b(p["g1"]), pad_b(p["be1"]), pad_b(p["g2"]), pad_b(p["be2"])],
        axis=0).astype(jnp.float32)                                # (8, 192) f32
    return w_pack, b_pack


def make_mask():
    """Block-diagonal batch mask (tokens only attend within their own batch element),
    already tiled per head: shape (H*BS, BS), values {0, -1e30}, f32."""
    tok = jnp.arange(BS) // S
    m = jnp.where(tok[:, None] == tok[None, :], 0.0, -1e30).astype(jnp.float32)   # (BS, BS)
    return jnp.tile(m, (H, 1))                                                     # (H*BS, BS)


def transformer_encoder_block(x, params):
    """x: (B, S, E) float32. params: dict of weights (in,out layout) / biases / LN affine."""
    w_pack, b_pack = pack_params(params)
    mask = make_mask()
    x2d = x.reshape(BS, E)                                        # flatten tokens host-side
    vmem = pl.BlockSpec(memory_space=pltpu.MemorySpace.VMEM)      # full arrays, single step
    out2d = pl.pallas_call(
        encoder_block_kernel,
        out_shape=jax.ShapeDtypeStruct((BS, E), x.dtype),
        in_specs=[vmem, vmem, vmem, vmem],
        out_specs=vmem,
    )(x2d, w_pack, b_pack, mask)
    return out2d.reshape(B, S, E)


# ---------------- pure-JAX reference (mirrors the PyTorch forward, f32) ----------------
def reference(x, p):
    def ln(v, g, b):
        m = jnp.mean(v, axis=-1, keepdims=True)
        var = jnp.mean((v - m) ** 2, axis=-1, keepdims=True)
        return (v - m) / jnp.sqrt(var + LN_EPS) * g + b

    q = x @ p["wq"] + p["bq"][0]
    k = x @ p["wk"] + p["bk"][0]
    v = x @ p["wv"] + p["bv"][0]
    outs = []
    for h in range(H):
        qh = q[:, :, h * DK:(h + 1) * DK]
        kh = k[:, :, h * DK:(h + 1) * DK]
        vh = v[:, :, h * DK:(h + 1) * DK]
        s = jnp.einsum("bqd,bkd->bqk", qh, kh) / math.sqrt(DK)
        a = jax.nn.softmax(s, axis=-1)
        outs.append(jnp.einsum("bqk,bkd->bqd", a, vh))
    attn = jnp.concatenate(outs, axis=-1) @ p["wo"] + p["bo"][0]
    y1 = ln(x + attn, p["g1"][0], p["be1"][0])
    ff = jnp.maximum(y1 @ p["w1"] + p["b1"][0], 0.0) @ p["w2"] + p["b2"][0]
    return ln(y1 + ff, p["g2"][0], p["be2"][0])


def make_params(key):
    ks = jax.random.split(key, 12)
    n = lambda k, shape, s=0.05: (jax.random.normal(k, shape, jnp.float32) * s)
    return {
        "wq": n(ks[0], (E, E)), "bq": n(ks[1], (1, E)),
        "wk": n(ks[2], (E, E)), "bk": n(ks[3], (1, E)),
        "wv": n(ks[4], (E, E)), "bv": n(ks[5], (1, E)),
        "wo": n(ks[6], (E, E)), "bo": n(ks[7], (1, E)),
        "g1": jnp.ones((1, E), jnp.float32), "be1": jnp.zeros((1, E), jnp.float32),
        "w1": n(ks[8], (E, F)), "b1": n(ks[9], (1, F)),
        "w2": n(ks[10], (F, E)), "b2": n(ks[11], (1, E)),
        "g2": jnp.ones((1, E), jnp.float32), "be2": jnp.zeros((1, E), jnp.float32),
    }


if __name__ == "__main__":
    key = jax.random.PRNGKey(0)
    kx, kp = jax.random.split(key)
    x = jax.random.normal(kx, (B, S, E), jnp.float32)
    params = make_params(kp)

    out = transformer_encoder_block(x, params)
    out = jax.block_until_ready(out)

    ref = reference(x, params)
    assert out.shape == (B, S, E)
    max_err = float(jnp.max(jnp.abs(out - ref)))
    # tolerance loosened vs f32-exact: bf16 MXU inputs (f32 accumulation) + EUP approx reciprocal
    assert jnp.allclose(out, ref, atol=3e-2, rtol=3e-2), max_err
    print("KERNEL_OK")
</pallas_src>

<mosaic_0001>
module attributes {stable_mosaic.version = 11 : i64} {
  func.func @encoder_block_kernel(%arg0: memref<16x32xf32, #tpu.memory_space<vmem>>, %arg1: memref<128x192xbf16, #tpu.memory_space<vmem>>, %arg2: memref<8x192xf32, #tpu.memory_space<vmem>>, %arg3: memref<64x16xf32, #tpu.memory_space<vmem>>, %arg4: memref<16x32xf32, #tpu.memory_space<vmem>>) attributes {dimension_semantics = [], scalar_prefetch = 0 : i64, scratch_operands = 0 : i64, tpu.core_type = #tpu.core_type<tc>} {
    %c0 = arith.constant 0 : index
    %c0_0 = arith.constant 0 : index
    %0 = vector.load %arg0[%c0, %c0_0] : memref<16x32xf32, #tpu.memory_space<vmem>>, vector<16x32xf32>
    %1 = arith.truncf %0 : vector<16x32xf32> to vector<16x32xbf16>
    %c0_1 = arith.constant 0 : index
    %c0_2 = arith.constant 0 : index
    %2 = vector.load %arg1[%c0_1, %c0_2] : memref<128x192xbf16, #tpu.memory_space<vmem>>, vector<32x192xbf16>
    %cst = arith.constant dense<0.000000e+00> : vector<16x192xf32>
    %3 = tpu.matmul %1, %2, %cst {dimension_numbers = #tpu.dot_dimension_numbers<[1], [0], [0], [1], [0, 0, 1, 1], [], []>} : vector<16x32xbf16>, vector<32x192xbf16>, vector<16x192xf32> -> vector<16x192xf32>
    %c0_3 = arith.constant 0 : index
    %c0_4 = arith.constant 0 : index
    %4 = vector.load %arg2[%c0_3, %c0_4] : memref<8x192xf32, #tpu.memory_space<vmem>>, vector<1x192xf32>
    %5 = vector.broadcast %4 : vector<1x192xf32> to vector<16x192xf32>
    %6 = arith.addf %3, %5 : vector<16x192xf32>
    %7 = arith.truncf %6 : vector<16x192xf32> to vector<16x192xbf16>
    %8 = vector.extract_strided_slice %7 {offsets = [0, 0], sizes = [16, 8], strides = [1, 1]} : vector<16x192xbf16> to vector<16x8xbf16>
    %9 = vector.extract_strided_slice %7 {offsets = [0, 32], sizes = [16, 8], strides = [1, 1]} : vector<16x192xbf16> to vector<16x8xbf16>
    %cst_5 = arith.constant dense<0.000000e+00> : vector<16x16xf32>
    %10 = tpu.matmul %8, %9, %cst_5 {dimension_numbers = #tpu.dot_dimension_numbers<[1], [1], [0], [0], [0, 0, 1, 0], [], []>} : vector<16x8xbf16>, vector<16x8xbf16>, vector<16x16xf32> -> vector<16x16xf32>
    %11 = vector.extract_strided_slice %7 {offsets = [0, 8], sizes = [16, 8], strides = [1, 1]} : vector<16x192xbf16> to vector<16x8xbf16>
    %12 = vector.extract_strided_slice %7 {offsets = [0, 40], sizes = [16, 8], strides = [1, 1]} : vector<16x192xbf16> to vector<16x8xbf16>
    %cst_6 = arith.constant dense<0.000000e+00> : vector<16x16xf32>
    %13 = tpu.matmul %11, %12, %cst_6 {dimension_numbers = #tpu.dot_dimension_numbers<[1], [1], [0], [0], [0, 0, 1, 0], [], []>} : vector<16x8xbf16>, vector<16x8xbf16>, vector<16x16xf32> -> vector<16x16xf32>
    %14 = vector.extract_strided_slice %7 {offsets = [0, 16], sizes = [16, 8], strides = [1, 1]} : vector<16x192xbf16> to vector<16x8xbf16>
    %15 = vector.extract_strided_slice %7 {offsets = [0, 48], sizes = [16, 8], strides = [1, 1]} : vector<16x192xbf16> to vector<16x8xbf16>
    %cst_7 = arith.constant dense<0.000000e+00> : vector<16x16xf32>
    %16 = tpu.matmul %14, %15, %cst_7 {dimension_numbers = #tpu.dot_dimension_numbers<[1], [1], [0], [0], [0, 0, 1, 0], [], []>} : vector<16x8xbf16>, vector<16x8xbf16>, vector<16x16xf32> -> vector<16x16xf32>
    %17 = vector.extract_strided_slice %7 {offsets = [0, 24], sizes = [16, 8], strides = [1, 1]} : vector<16x192xbf16> to vector<16x8xbf16>
    %18 = vector.extract_strided_slice %7 {offsets = [0, 56], sizes = [16, 8], strides = [1, 1]} : vector<16x192xbf16> to vector<16x8xbf16>
    %cst_8 = arith.constant dense<0.000000e+00> : vector<16x16xf32>
    %19 = tpu.matmul %17, %18, %cst_8 {dimension_numbers = #tpu.dot_dimension_numbers<[1], [1], [0], [0], [0, 0, 1, 0], [], []>} : vector<16x8xbf16>, vector<16x8xbf16>, vector<16x16xf32> -> vector<16x16xf32>
    %20 = tpu.concatenate %10, %13, %16, %19 in 0 : vector<16x16xf32>, vector<16x16xf32>, vector<16x16xf32>, vector<16x16xf32> -> vector<64x16xf32>
    %c0_9 = arith.constant 0 : index
    %c0_10 = arith.constant 0 : index
    %21 = vector.load %arg3[%c0_9, %c0_10] : memref<64x16xf32, #tpu.memory_space<vmem>>, vector<64x16xf32>
    %22 = arith.addf %20, %21 : vector<64x16xf32>
    %cst_11 = arith.constant dense<0xFF800000> : vector<64xf32>
    %23 = vector.multi_reduction <maximumf>, %22, %cst_11 [1] : vector<64x16xf32> to vector<64xf32>
    %24 = vector.shape_cast %23 : vector<64xf32> to vector<64x1xf32>
    %25 = vector.broadcast %24 : vector<64x1xf32> to vector<64x16xf32>
    %26 = arith.subf %22, %25 : vector<64x16xf32>
    %27 = math.exp %26 : vector<64x16xf32>
    %cst_12 = arith.constant dense<0.000000e+00> : vector<64xf32>
    %28 = vector.multi_reduction <add>, %27, %cst_12 [1] : vector<64x16xf32> to vector<64xf32>
    %29 = vector.shape_cast %28 : vector<64xf32> to vector<64x1xf32>
    %30 = tpu.reciprocal %29 {approx = true} : vector<64x1xf32> -> vector<64x1xf32>
    %31 = vector.broadcast %30 : vector<64x1xf32> to vector<64x16xf32>
    %32 = arith.mulf %27, %31 : vector<64x16xf32>
    %33 = arith.truncf %32 : vector<64x16xf32> to vector<64x16xbf16>
    %cst_13 = arith.constant 0.000000e+00 : f32
    %34 = vector.broadcast %cst_13 : f32 to vector<16x32xf32>
    %35 = vector.extract_strided_slice %33 {offsets = [0, 0], sizes = [16, 16], strides = [1, 1]} : vector<64x16xbf16> to vector<16x16xbf16>
    %36 = vector.extract_strided_slice %7 {offsets = [0, 64], sizes = [16, 32], strides = [1, 1]} : vector<16x192xbf16> to vector<16x32xbf16>
    %cst_14 = arith.constant dense<0.000000e+00> : vector<16x32xf32>
    %37 = tpu.matmul %35, %36, %cst_14 {dimension_numbers = #tpu.dot_dimension_numbers<[1], [0], [0], [1], [0, 0, 1, 1], [], []>} : vector<16x16xbf16>, vector<16x32xbf16>, vector<16x32xf32> -> vector<16x32xf32>
    %38 = arith.addf %34, %37 : vector<16x32xf32>
    %39 = vector.extract_strided_slice %33 {offsets = [16, 0], sizes = [16, 16], strides = [1, 1]} : vector<64x16xbf16> to vector<16x16xbf16>
    %40 = vector.extract_strided_slice %7 {offsets = [0, 96], sizes = [16, 32], strides = [1, 1]} : vector<16x192xbf16> to vector<16x32xbf16>
    %cst_15 = arith.constant dense<0.000000e+00> : vector<16x32xf32>
    %41 = tpu.matmul %39, %40, %cst_15 {dimension_numbers = #tpu.dot_dimension_numbers<[1], [0], [0], [1], [0, 0, 1, 1], [], []>} : vector<16x16xbf16>, vector<16x32xbf16>, vector<16x32xf32> -> vector<16x32xf32>
    %42 = arith.addf %38, %41 : vector<16x32xf32>
    %43 = vector.extract_strided_slice %33 {offsets = [32, 0], sizes = [16, 16], strides = [1, 1]} : vector<64x16xbf16> to vector<16x16xbf16>
    %44 = vector.extract_strided_slice %7 {offsets = [0, 128], sizes = [16, 32], strides = [1, 1]} : vector<16x192xbf16> to vector<16x32xbf16>
    %cst_16 = arith.constant dense<0.000000e+00> : vector<16x32xf32>
    %45 = tpu.matmul %43, %44, %cst_16 {dimension_numbers = #tpu.dot_dimension_numbers<[1], [0], [0], [1], [0, 0, 1, 1], [], []>} : vector<16x16xbf16>, vector<16x32xbf16>, vector<16x32xf32> -> vector<16x32xf32>
    %46 = arith.addf %42, %45 : vector<16x32xf32>
    %47 = vector.extract_strided_slice %33 {offsets = [48, 0], sizes = [16, 16], strides = [1, 1]} : vector<64x16xbf16> to vector<16x16xbf16>
    %48 = vector.extract_strided_slice %7 {offsets = [0, 160], sizes = [16, 32], strides = [1, 1]} : vector<16x192xbf16> to vector<16x32xbf16>
    %cst_17 = arith.constant dense<0.000000e+00> : vector<16x32xf32>
    %49 = tpu.matmul %47, %48, %cst_17 {dimension_numbers = #tpu.dot_dimension_numbers<[1], [0], [0], [1], [0, 0, 1, 1], [], []>} : vector<16x16xbf16>, vector<16x32xbf16>, vector<16x32xf32> -> vector<16x32xf32>
    %50 = arith.addf %46, %49 : vector<16x32xf32>
    %c1 = arith.constant 1 : index
    %c0_18 = arith.constant 0 : index
    %51 = vector.load %arg2[%c1, %c0_18] : memref<8x192xf32, #tpu.memory_space<vmem>>, vector<1x32xf32>
    %52 = vector.broadcast %51 : vector<1x32xf32> to vector<16x32xf32>
    %53 = arith.addf %50, %52 : vector<16x32xf32>
    %54 = arith.addf %0, %53 : vector<16x32xf32>
    %c4 = arith.constant 4 : index
    %c0_19 = arith.constant 0 : index
    %55 = vector.load %arg2[%c4, %c0_19] : memref<8x192xf32, #tpu.memory_space<vmem>>, vector<1x32xf32>
    %c5 = arith.constant 5 : index
    %c0_20 = arith.constant 0 : index
    %56 = vector.load %arg2[%c5, %c0_20] : memref<8x192xf32, #tpu.memory_space<vmem>>, vector<1x32xf32>
    %cst_21 = arith.constant dense<0.000000e+00> : vector<16xf32>
    %57 = vector.multi_reduction <add>, %54, %cst_21 [1] : vector<16x32xf32> to vector<16xf32>
    %58 = vector.shape_cast %57 : vector<16xf32> to vector<16x1xf32>
    %cst_22 = arith.constant 3.200000e+01 : f32
    %59 = vector.broadcast %cst_22 : f32 to vector<16x1xf32>
    %60 = arith.divf %58, %59 : vector<16x1xf32>
    %61 = vector.broadcast %60 : vector<16x1xf32> to vector<16x32xf32>
    %62 = arith.subf %54, %61 : vector<16x32xf32>
    %63 = vector.broadcast %60 : vector<16x1xf32> to vector<16x32xf32>
    %64 = arith.subf %54, %63 : vector<16x32xf32>
    %65 = arith.mulf %62, %64 : vector<16x32xf32>
    %cst_23 = arith.constant dense<0.000000e+00> : vector<16xf32>
    %66 = vector.multi_reduction <add>, %65, %cst_23 [1] : vector<16x32xf32> to vector<16xf32>
    %67 = vector.shape_cast %66 : vector<16xf32> to vector<16x1xf32>
    %cst_24 = arith.constant 3.200000e+01 : f32
    %68 = vector.broadcast %cst_24 : f32 to vector<16x1xf32>
    %69 = arith.divf %67, %68 : vector<16x1xf32>
    %cst_25 = arith.constant 9.99999974E-6 : f32
    %70 = vector.broadcast %cst_25 : f32 to vector<16x1xf32>
    %71 = arith.addf %69, %70 : vector<16x1xf32>
    %72 = math.rsqrt %71 : vector<16x1xf32>
    %73 = vector.broadcast %60 : vector<16x1xf32> to vector<16x32xf32>
    %74 = arith.subf %54, %73 : vector<16x32xf32>
    %75 = vector.broadcast %72 : vector<16x1xf32> to vector<16x32xf32>
    %76 = arith.mulf %74, %75 : vector<16x32xf32>
    %77 = vector.broadcast %55 : vector<1x32xf32> to vector<16x32xf32>
    %78 = arith.mulf %76, %77 : vector<16x32xf32>
    %79 = vector.broadcast %56 : vector<1x32xf32> to vector<16x32xf32>
    %80 = arith.addf %78, %79 : vector<16x32xf32>
    %c32 = arith.constant 32 : index
    %c0_26 = arith.constant 0 : index
    %81 = vector.load %arg1[%c32, %c0_26] : memref<128x192xbf16, #tpu.memory_space<vmem>>, vector<32x64xbf16>
    %c64 = arith.constant 64 : index
    %c0_27 = arith.constant 0 : index
    %82 = vector.load %arg1[%c64, %c0_27] : memref<128x192xbf16, #tpu.memory_space<vmem>>, vector<64x32xbf16>
    %83 = arith.truncf %80 : vector<16x32xf32> to vector<16x32xbf16>
    %cst_28 = arith.constant dense<0.000000e+00> : vector<16x64xf32>
    %84 = tpu.matmul %83, %81, %cst_28 {dimension_numbers = #tpu.dot_dimension_numbers<[1], [0], [0], [1], [0, 0, 1, 1], [], []>} : vector<16x32xbf16>, vector<32x64xbf16>, vector<16x64xf32> -> vector<16x64xf32>
    %c2 = arith.constant 2 : index
    %c0_29 = arith.constant 0 : index
    %85 = vector.load %arg2[%c2, %c0_29] : memref<8x192xf32, #tpu.memory_space<vmem>>, vector<1x64xf32>
    %86 = vector.broadcast %85 : vector<1x64xf32> to vector<16x64xf32>
    %87 = arith.addf %84, %86 : vector<16x64xf32>
    %cst_30 = arith.constant 0.000000e+00 : f32
    %88 = vector.broadcast %cst_30 : f32 to vector<16x64xf32>
    %89 = arith.maximumf %87, %88 : vector<16x64xf32>
    %90 = arith.truncf %89 : vector<16x64xf32> to vector<16x64xbf16>
    %cst_31 = arith.constant dense<0.000000e+00> : vector<16x32xf32>
    %91 = tpu.matmul %90, %82, %cst_31 {dimension_numbers = #tpu.dot_dimension_numbers<[1], [0], [0], [1], [0, 0, 1, 1], [], []>} : vector<16x64xbf16>, vector<64x32xbf16>, vector<16x32xf32> -> vector<16x32xf32>
    %c3 = arith.constant 3 : index
    %c0_32 = arith.constant 0 : index
    %92 = vector.load %arg2[%c3, %c0_32] : memref<8x192xf32, #tpu.memory_space<vmem>>, vector<1x32xf32>
    %93 = vector.broadcast %92 : vector<1x32xf32> to vector<16x32xf32>
    %94 = arith.addf %91, %93 : vector<16x32xf32>
    %95 = arith.addf %80, %94 : vector<16x32xf32>
    %c6 = arith.constant 6 : index
    %c0_33 = arith.constant 0 : index
    %96 = vector.load %arg2[%c6, %c0_33] : memref<8x192xf32, #tpu.memory_space<vmem>>, vector<1x32xf32>
    %c7 = arith.constant 7 : index
    %c0_34 = arith.constant 0 : index
    %97 = vector.load %arg2[%c7, %c0_34] : memref<8x192xf32, #tpu.memory_space<vmem>>, vector<1x32xf32>
    %cst_35 = arith.constant dense<0.000000e+00> : vector<16xf32>
    %98 = vector.multi_reduction <add>, %95, %cst_35 [1] : vector<16x32xf32> to vector<16xf32>
    %99 = vector.shape_cast %98 : vector<16xf32> to vector<16x1xf32>
    %cst_36 = arith.constant 3.200000e+01 : f32
    %100 = vector.broadcast %cst_36 : f32 to vector<16x1xf32>
    %101 = arith.divf %99, %100 : vector<16x1xf32>
    %102 = vector.broadcast %101 : vector<16x1xf32> to vector<16x32xf32>
    %103 = arith.subf %95, %102 : vector<16x32xf32>
    %104 = vector.broadcast %101 : vector<16x1xf32> to vector<16x32xf32>
    %105 = arith.subf %95, %104 : vector<16x32xf32>
    %106 = arith.mulf %103, %105 : vector<16x32xf32>
    %cst_37 = arith.constant dense<0.000000e+00> : vector<16xf32>
    %107 = vector.multi_reduction <add>, %106, %cst_37 [1] : vector<16x32xf32> to vector<16xf32>
    %108 = vector.shape_cast %107 : vector<16xf32> to vector<16x1xf32>
    %cst_38 = arith.constant 3.200000e+01 : f32
    %109 = vector.broadcast %cst_38 : f32 to vector<16x1xf32>
    %110 = arith.divf %108, %109 : vector<16x1xf32>
    %cst_39 = arith.constant 9.99999974E-6 : f32
    %111 = vector.broadcast %cst_39 : f32 to vector<16x1xf32>
    %112 = arith.addf %110, %111 : vector<16x1xf32>
    %113 = math.rsqrt %112 : vector<16x1xf32>
    %114 = vector.broadcast %101 : vector<16x1xf32> to vector<16x32xf32>
    %115 = arith.subf %95, %114 : vector<16x32xf32>
    %116 = vector.broadcast %113 : vector<16x1xf32> to vector<16x32xf32>
    %117 = arith.mulf %115, %116 : vector<16x32xf32>
    %118 = vector.broadcast %96 : vector<1x32xf32> to vector<16x32xf32>
    %119 = arith.mulf %117, %118 : vector<16x32xf32>
    %120 = vector.broadcast %97 : vector<1x32xf32> to vector<16x32xf32>
    %121 = arith.addf %119, %120 : vector<16x32xf32>
    %c0_40 = arith.constant 0 : index
    %c0_41 = arith.constant 0 : index
    %122 = vector.load %arg4[%c0_40, %c0_41] : memref<16x32xf32, #tpu.memory_space<vmem>>, vector<16x32xf32>
    tpu.vector_store %arg4[%c0_40, %c0_41], %121 {strides = array<i32>} : memref<16x32xf32, #tpu.memory_space<vmem>>, vector<16x32xf32>,
    return
  }
}

</mosaic_0001>

<llo_original>
// kernel: tpu_custom_call.1
$region0: #{tpu_custom_call.1}
  #allocation0 [shape = 'u32[]', space=smem, size = 0x4, offset = 0x4, fixed_abs, tag = 'smem constant byte address 0x4 - core index']
  #allocation1 [shape = 'u32[144,128]{1,0:T(1,128)}', space=vmem, size = 0x12000, scoped, tag = 'internal scratch']
  %s0 = inlined_call_operand.vmem [shape: f32[16,32], index: 0, kind: input, shape index: {}]
  %s1 = inlined_call_operand.vmem [shape: bf16[128,192], index: 1, kind: input, shape index: {}]
  %s2 = inlined_call_operand.vmem [shape: f32[8,192], index: 2, kind: input, shape index: {}]
  %s3 = inlined_call_operand.vmem [shape: f32[64,16], index: 3, kind: input, shape index: {}]
  %s4 = inlined_call_operand.hbm [shape: f32[16,32], index: 4, kind: output, shape index: {}]
  %s5 = sld [smem:[#allocation0]]
  $region26: #{tpu_custom_call.1} parent=0
    _
  %s7 = ssub.s32 1, %s5
  %s8 = scalar_select 0, %s7, %s5
  $region1: #{tpu_custom_call.1} parent=0
    #allocation2 [shape = 'u8[8192]{0}', space=vmem, size = 0x2000, scoped, tag = 'output window, operand 0, single buffered']
    #allocation3 [shape = 's32[1]{0}', space=sflag, size = 0x4, scoped, tag = 'scoped memory for tpu_custom_call.1']
    %9 = vsyncpa [#allocation3], 0
    // Predicated region
    $region2: #{tpu_custom_call.1} parent=1 // pred_check
      _
    $region3: #{tpu_custom_call.1} parent=1 // pred_check_branch
      %11 = sbr.rel (0) target = $region5
    $region4: #{tpu_custom_call.1} parent=1 // pred_region
      _
    $region5: #{tpu_custom_call.1} parent=1 // pred_fallthru
      _
    // Predicated region
    $region6: #{tpu_custom_call.1} parent=1 // pred_check
      _
    $region7: #{tpu_custom_call.1} parent=1 // pred_check_branch
      %13 = sbr.rel (0) target = $region9
    $region8: #{tpu_custom_call.1} parent=1 // pred_region
      _
    $region9: #{tpu_custom_call.1} parent=1 // pred_fallthru
      _
    // Predicated region
    $region10: #{tpu_custom_call.1} parent=1 // pred_check
      _
    $region11: #{tpu_custom_call.1} parent=1 // pred_check_branch
      %15 = sbr.rel (0) target = $region13
    $region12: #{tpu_custom_call.1} parent=1 // pred_region
      _
    $region13: #{tpu_custom_call.1} parent=1 // pred_fallthru
      _
    // Predicated region
    $region14: #{tpu_custom_call.1} parent=1 // pred_check
      _
    $region15: #{tpu_custom_call.1} parent=1 // pred_check_branch
      %17 = sbr.rel (0) target = $region17
    $region16: #{tpu_custom_call.1} parent=1 // pred_region
      _
    $region17: #{tpu_custom_call.1} parent=1 // pred_fallthru
      _
    %v19 = vld [vmem:[%s0] sm:$0xff]
    %v20 = vld [vmem:[%s0 + $0x8] sm:$0xff]
    %v21 = vpack.c.bf16 %v20, %v19
    %v22 = vld [vmem:[%s1] sm:$0xff]
    %v23 = vld [vmem:[%s1 + $0x8] sm:$0xff]
    %v24 = vld [vmem:[%s1 + $0x10] sm:$0xff]
    %v25 = vld [vmem:[%s1 + $0x18] sm:$0xff]
    %v26 = vld [vmem:[%s2] ss:$8 sm:$0x3]
    %v28 = vlaneseq
    %v29 = vshrl.u32 %v28, 7
    %v30 = vsub.s32 0, %v29
    %v31 = vrot.slane %v26, %v30
    %v32 = vlaneseq
    %v33 = vshrl.u32 %v32, 7
    %v34 = vsub.s32 1, %v33
    %v35 = vrot.slane %v26, %v34
    %v42 = vunpack.c.l.b16 %v22
    %v43 = vunpack.c.h.b16 %v22
    %v44 = vunpack.c.l.b16 %v23
    %v45 = vunpack.c.h.b16 %v23
    %v46 = vunpack.c.l.b16 %v24
    %v47 = vunpack.c.h.b16 %v24
    %v48 = vunpack.c.l.b16 %v25
    %v49 = vunpack.c.h.b16 %v25
    %v50 = vpack.c.b16 %v44, %v42
    %v51 = vpack.c.b16 %v45, %v43
    %v52 = vpack.c.b16 %v48, %v46
    %v53 = vpack.c.b16 %v49, %v47
    %vm58 = vcmask 261120
    %v60 = vsel %vm58, %v21, 0
    %62 = vmatprep.subr.bf16.mxu0 0
    %63 = vmatpush1.bf16.msra.mxu0 0
    %64 = vmatprep.subr.bf16.mxu0 0
    %65 = vmatpush1.bf16.msra.mxu0 0
    %66 = vmatprep.subr.bf16.mxu0 0
    %67 = vmatpush1.bf16.msra.mxu0 0
    %68 = vmatprep.subr.bf16.mxu0 0
    %69 = vmatpush1.bf16.msra.mxu0 0
    %70 = vmatprep.subr.bf16.mxu0 0
    %71 = vmatpush1.bf16.msra.mxu0 0
    %72 = vmatprep.subr.bf16.mxu0 0
    %73 = vmatpush1.bf16.msra.mxu0 0
    %74 = vmatprep.subr.bf16.mxu0 %v53
    %75 = vmatpush1.bf16.msra.mxu0 %v52
    %76 = vmatprep.subr.bf16.mxu0 %v51
    %77 = vmatpush1.bf16.msra.mxu0 %v50
    %78 = vmatprep.subr.bf16.mxu0 0
    %79 = vmatpush2.bf16.msra.mxu0 0
    %80 = vmatprep.subr.bf16.mxu0 0
    %81 = vmatpush2.bf16.msra.mxu0 0
    %82 = vmatprep.subr.bf16.mxu0 0
    %83 = vmatpush2.bf16.msra.mxu0 0
    %84 = vmatprep.subr.bf16.mxu0 0
    %85 = vmatpush2.bf16.msra.mxu0 0
    %86 = vmatprep.subr.bf16.mxu0 0
    %87 = vmatpush2.bf16.msra.mxu0 0
    %88 = vmatprep.subr.bf16.mxu0 0
    %89 = vmatpush2.bf16.msra.mxu0 0
    %90 = vmatprep.subr.bf16.mxu0 0
    %91 = vmatpush2.bf16.msra.mxu0 0
    %92 = vmatprep.subr.bf16.mxu0 0
    %93 = vmatpush2.bf16.msra.mxu0 0
    %94 = vmatprep.mubr.bf16.mxu0 0
    %95 = vmatmul.mubr.bf16.gmra.mxu0 %v60
    %v96 = vpop.f32.mrf.mxu0
    %v97 = vadd.f32 %v31, %v96
    %v98 = vpop.f32.mrf.mxu0
    %v99 = vadd.f32 %v35, %v98
    %v100 = vpop.f32.mrf.mxu0
    %v101 = vadd.f32 %v31, %v100
    %v102 = vpop.f32.mrf.mxu0
    %v103 = vadd.f32 %v35, %v102
    %104 = vdwg.mxu0
    %v105 = vpack.c.bf16 %v101, %v97
    %v106 = vpack.c.bf16 %v103, %v99
    %108 = vrot.lane.b32.xlu0 %v105, 96
    %v109 = vpop.permute.xlu0 %108
    %vm110 = vcmask 64512
    %v112 = vsel %vm110, %v105, 0
    %v115 = vsel %vm110, %v109, 0
    %117 = vmatprep.subr.bf16.mxu0 0
    %118 = vmatpush1.bf16.xpose.msra.mxu0 0
    %119 = vmatprep.subr.bf16.mxu0 0
    %120 = vmatpush1.bf16.xpose.msra.mxu0 0
    %121 = vmatprep.subr.bf16.mxu0 0
    %122 = vmatpush1.bf16.xpose.msra.mxu0 0
    %123 = vmatprep.subr.bf16.mxu0 0
    %124 = vmatpush1.bf16.xpose.msra.mxu0 0
    %125 = vmatprep.subr.bf16.mxu0 0
    %126 = vmatpush1.bf16.xpose.msra.mxu0 0
    %127 = vmatprep.subr.bf16.mxu0 0
    %128 = vmatpush1.bf16.xpose.msra.mxu0 0
    %129 = vmatprep.subr.bf16.mxu0 0
    %130 = vmatpush1.bf16.xpose.msra.mxu0 0
    %131 = vmatprep.subr.bf16.mxu0 0
    %132 = vmatpush1.bf16.xpose.msra.mxu0 %v115
    %133 = vmatprep.subr.bf16.mxu0 0
    %134 = vmatpush2.bf16.xpose.msra.mxu0 0
    %135 = vmatprep.subr.bf16.mxu0 0
    %136 = vmatpush2.bf16.xpose.msra.mxu0 0
    %137 = vmatprep.subr.bf16.mxu0 0
    %138 = vmatpush2.bf16.xpose.msra.mxu0 0
    %139 = vmatprep.subr.bf16.mxu0 0
    %140 = vmatpush2.bf16.xpose.msra.mxu0 0
    %141 = vmatprep.subr.bf16.mxu0 0
    %142 = vmatpush2.bf16.xpose.msra.mxu0 0
    %143 = vmatprep.subr.bf16.mxu0 0
    %144 = vmatpush2.bf16.xpose.msra.mxu0 0
    %145 = vmatprep.subr.bf16.mxu0 0
    %146 = vmatpush2.bf16.xpose.msra.mxu0 0
    %147 = vmatprep.subr.bf16.mxu0 0
    %148 = vmatpush2.bf16.xpose.msra.mxu0 0
    %149 = vmatprep.mubr.bf16.mxu0 0
    %150 = vmatmul.mubr.bf16.gmra.mxu0 %v112
    %v151 = vpop.f32.mrf.mxu0
    %v152 = vadd.f32 0.0, %v151
    %v153 = vpop.f32.mrf.mxu0
    %v154 = vpop.f32.mrf.mxu0
    %v155 = vadd.f32 0.0, %v154
    %v156 = vpop.f32.mrf.mxu0
    %157 = vdwg.mxu0
    %158 = vrot.lane.b32.xlu0 %v105, 120
    %v159 = vpop.permute.xlu0 %158
    %160 = vrot.lane.b32.xlu0 %v105, 88
    %v161 = vpop.permute.xlu0 %160
    %v163 = vsel %vm110, %v159, 0
    %v166 = vsel %vm110, %v161, 0
    %168 = vmatprep.subr.bf16.mxu0 0
    %169 = vmatpush1.bf16.xpose.msra.mxu0 0
    %170 = vmatprep.subr.bf16.mxu0 0
    %171 = vmatpush1.bf16.xpose.msra.mxu0 0
    %172 = vmatprep.subr.bf16.mxu0 0
    %173 = vmatpush1.bf16.xpose.msra.mxu0 0
    %174 = vmatprep.subr.bf16.mxu0 0
    %175 = vmatpush1.bf16.xpose.msra.mxu0 0
    %176 = vmatprep.subr.bf16.mxu0 0
    %177 = vmatpush1.bf16.xpose.msra.mxu0 0
    %178 = vmatprep.subr.bf16.mxu0 0
    %179 = vmatpush1.bf16.xpose.msra.mxu0 0
    %180 = vmatprep.subr.bf16.mxu0 0
    %181 = vmatpush1.bf16.xpose.msra.mxu0 0
    %182 = vmatprep.subr.bf16.mxu0 0
    %183 = vmatpush1.bf16.xpose.msra.mxu0 %v166
    %184 = vmatprep.subr.bf16.mxu0 0
    %185 = vmatpush2.bf16.xpose.msra.mxu0 0
    %186 = vmatprep.subr.bf16.mxu0 0
    %187 = vmatpush2.bf16.xpose.msra.mxu0 0
    %188 = vmatprep.subr.bf16.mxu0 0
    %189 = vmatpush2.bf16.xpose.msra.mxu0 0
    %190 = vmatprep.subr.bf16.mxu0 0
    %191 = vmatpush2.bf16.xpose.msra.mxu0 0
    %192 = vmatprep.subr.bf16.mxu0 0
    %193 = vmatpush2.bf16.xpose.msra.mxu0 0
    %194 = vmatprep.subr.bf16.mxu0 0
    %195 = vmatpush2.bf16.xpose.msra.mxu0 0
    %196 = vmatprep.subr.bf16.mxu0 0
    %197 = vmatpush2.bf16.xpose.msra.mxu0 0
    %198 = vmatprep.subr.bf16.mxu0 0
    %199 = vmatpush2.bf16.xpose.msra.mxu0 0
    %200 = vmatprep.mubr.bf16.mxu0 0
    %201 = vmatmul.mubr.bf16.gmra.mxu0 %v163
    %v202 = vpop.f32.mrf.mxu0
    %v203 = vadd.f32 0.0, %v202
    %v204 = vpop.f32.mrf.mxu0
    %v205 = vpop.f32.mrf.mxu0
    %v206 = vadd.f32 0.0, %v205
    %v207 = vpop.f32.mrf.mxu0
    %208 = vdwg.mxu0
    %209 = vrot.lane.b32.xlu0 %v105, 112
    %v210 = vpop.permute.xlu0 %209
    %211 = vrot.lane.b32.xlu0 %v105, 80
    %v212 = vpop.permute.xlu0 %211
    %v214 = vsel %vm110, %v210, 0
    %v217 = vsel %vm110, %v212, 0
    %219 = vmatprep.subr.bf16.mxu0 0
    %220 = vmatpush1.bf16.xpose.msra.mxu0 0
    %221 = vmatprep.subr.bf16.mxu0 0
    %222 = vmatpush1.bf16.xpose.msra.mxu0 0
    %223 = vmatprep.subr.bf16.mxu0 0
    %224 = vmatpush1.bf16.xpose.msra.mxu0 0
    %225 = vmatprep.subr.bf16.mxu0 0
    %226 = vmatpush1.bf16.xpose.msra.mxu0 0
    %227 = vmatprep.subr.bf16.mxu0 0
    %228 = vmatpush1.bf16.xpose.msra.mxu0 0
    %229 = vmatprep.subr.bf16.mxu0 0
    %230 = vmatpush1.bf16.xpose.msra.mxu0 0
    %231 = vmatprep.subr.bf16.mxu0 0
    %232 = vmatpush1.bf16.xpose.msra.mxu0 0
    %233 = vmatprep.subr.bf16.mxu0 0
    %234 = vmatpush1.bf16.xpose.msra.mxu0 %v217
    %235 = vmatprep.subr.bf16.mxu0 0
    %236 = vmatpush2.bf16.xpose.msra.mxu0 0
    %237 = vmatprep.subr.bf16.mxu0 0
    %238 = vmatpush2.bf16.xpose.msra.mxu0 0
    %239 = vmatprep.subr.bf16.mxu0 0
    %240 = vmatpush2.bf16.xpose.msra.mxu0 0
    %241 = vmatprep.subr.bf16.mxu0 0
    %242 = vmatpush2.bf16.xpose.msra.mxu0 0
    %243 = vmatprep.subr.bf16.mxu0 0
    %244 = vmatpush2.bf16.xpose.msra.mxu0 0
    %245 = vmatprep.subr.bf16.mxu0 0
    %246 = vmatpush2.bf16.xpose.msra.mxu0 0
    %247 = vmatprep.subr.bf16.mxu0 0
    %248 = vmatpush2.bf16.xpose.msra.mxu0 0
    %249 = vmatprep.subr.bf16.mxu0 0
    %250 = vmatpush2.bf16.xpose.msra.mxu0 0
    %251 = vmatprep.mubr.bf16.mxu0 0
    %252 = vmatmul.mubr.bf16.gmra.mxu0 %v214
    %v253 = vpop.f32.mrf.mxu0
    %v254 = vadd.f32 0.0, %v253
    %v255 = vpop.f32.mrf.mxu0
    %v256 = vpop.f32.mrf.mxu0
    %v257 = vadd.f32 0.0, %v256
    %v258 = vpop.f32.mrf.mxu0
    %259 = vdwg.mxu0
    %260 = vrot.lane.b32.xlu0 %v105, 104
    %v261 = vpop.permute.xlu0 %260
    %262 = vrot.lane.b32.xlu0 %v105, 72
    %v263 = vpop.permute.xlu0 %262
    %v265 = vsel %vm110, %v261, 0
    %v268 = vsel %vm110, %v263, 0
    %270 = vmatprep.subr.bf16.mxu0 0
    %271 = vmatpush1.bf16.xpose.msra.mxu0 0
    %272 = vmatprep.subr.bf16.mxu0 0
    %273 = vmatpush1.bf16.xpose.msra.mxu0 0
    %274 = vmatprep.subr.bf16.mxu0 0
    %275 = vmatpush1.bf16.xpose.msra.mxu0 0
    %276 = vmatprep.subr.bf16.mxu0 0
    %277 = vmatpush1.bf16.xpose.msra.mxu0 0
    %278 = vmatprep.subr.bf16.mxu0 0
    %279 = vmatpush1.bf16.xpose.msra.mxu0 0
    %280 = vmatprep.subr.bf16.mxu0 0
    %281 = vmatpush1.bf16.xpose.msra.mxu0 0
    %282 = vmatprep.subr.bf16.mxu0 0
    %283 = vmatpush1.bf16.xpose.msra.mxu0 0
    %284 = vmatprep.subr.bf16.mxu0 0
    %285 = vmatpush1.bf16.xpose.msra.mxu0 %v268
    %286 = vmatprep.subr.bf16.mxu0 0
    %287 = vmatpush2.bf16.xpose.msra.mxu0 0
    %288 = vmatprep.subr.bf16.mxu0 0
    %289 = vmatpush2.bf16.xpose.msra.mxu0 0
    %290 = vmatprep.subr.bf16.mxu0 0
    %291 = vmatpush2.bf16.xpose.msra.mxu0 0
    %292 = vmatprep.subr.bf16.mxu0 0
    %293 = vmatpush2.bf16.xpose.msra.mxu0 0
    %294 = vmatprep.subr.bf16.mxu0 0
    %295 = vmatpush2.bf16.xpose.msra.mxu0 0
    %296 = vmatprep.subr.bf16.mxu0 0
    %297 = vmatpush2.bf16.xpose.msra.mxu0 0
    %298 = vmatprep.subr.bf16.mxu0 0
    %299 = vmatpush2.bf16.xpose.msra.mxu0 0
    %300 = vmatprep.subr.bf16.mxu0 0
    %301 = vmatpush2.bf16.xpose.msra.mxu0 0
    %302 = vmatprep.mubr.bf16.mxu0 0
    %303 = vmatmul.mubr.bf16.gmra.mxu0 %v265
    %v304 = vpop.f32.mrf.mxu0
    %v305 = vadd.f32 0.0, %v304
    %v306 = vpop.f32.mrf.mxu0
    %v307 = vpop.f32.mrf.mxu0
    %v308 = vadd.f32 0.0, %v307
    %v309 = vpop.f32.mrf.mxu0
    %310 = vdwg.mxu0
    %v311 = vld [vmem:[%s3] sm:$0xff]
    %v312 = vld [vmem:[%s3 + $0x8] sm:$0xff]
    %v313 = vld [vmem:[%s3 + $0x10] sm:$0xff]
    %v314 = vld [vmem:[%s3 + $0x18] sm:$0xff]
    %v315 = vld [vmem:[%s3 + $0x20] sm:$0xff]
    %v316 = vld [vmem:[%s3 + $0x28] sm:$0xff]
    %v317 = vld [vmem:[%s3 + $0x30] sm:$0xff]
    %v318 = vld [vmem:[%s3 + $0x38] sm:$0xff]
    %v319 = vadd.f32 %v152, %v311
    %v320 = vadd.f32 %v155, %v312
    %v321 = vadd.f32 %v203, %v313
    %v322 = vadd.f32 %v206, %v314
    %v323 = vadd.f32 %v254, %v315
    %v324 = vadd.f32 %v257, %v316
    %v325 = vadd.f32 %v305, %v317
    %v326 = vadd.f32 %v308, %v318
    %vm327 = vcmask 130048
    %v328 = vsel %vm327, %v319, -inf
    %329 = vmax.xlane.f32.xlu0 %v328
    %v330 = vpop.xlane.xlu0 %329
    %v331 = vsel %vm327, %v320, -inf
    %332 = vmax.xlane.f32.xlu0 %v331
    %v333 = vpop.xlane.xlu0 %332
    %v334 = vsel %vm327, %v321, -inf
    %335 = vmax.xlane.f32.xlu0 %v334
    %v336 = vpop.xlane.xlu0 %335
    %v337 = vsel %vm327, %v322, -inf
    %338 = vmax.xlane.f32.xlu0 %v337
    %v339 = vpop.xlane.xlu0 %338
    %v340 = vsel %vm327, %v323, -inf
    %341 = vmax.xlane.f32.xlu0 %v340
    %v342 = vpop.xlane.xlu0 %341
    %v343 = vsel %vm327, %v324, -inf
    %344 = vmax.xlane.f32.xlu0 %v343
    %v345 = vpop.xlane.xlu0 %344
    %v346 = vsel %vm327, %v325, -inf
    %347 = vmax.xlane.f32.xlu0 %v346
    %v348 = vpop.xlane.xlu0 %347
    %v349 = vsel %vm327, %v326, -inf
    %350 = vmax.xlane.f32.xlu0 %v349
    %v351 = vpop.xlane.xlu0 %350
    %v352 = vsub.f32 %v319, %v330
    %v353 = vsub.f32 %v320, %v333
    %v354 = vsub.f32 %v321, %v336
    %v355 = vsub.f32 %v322, %v339
    %v356 = vsub.f32 %v323, %v342
    %v357 = vsub.f32 %v324, %v345
    %v358 = vsub.f32 %v325, %v348
    %v359 = vsub.f32 %v326, %v351
    %v360 = vmul.f32 %v352, 1.442695
    %v361 = vpow.pop %v360
    %v362 = vmul.f32 %v353, 1.442695
    %v363 = vpow.pop %v362
    %v364 = vmul.f32 %v354, 1.442695
    %v365 = vpow.pop %v364
    %v366 = vmul.f32 %v355, 1.442695
    %v367 = vpow.pop %v366
    %v368 = vmul.f32 %v356, 1.442695
    %v369 = vpow.pop %v368
    %v370 = vmul.f32 %v357, 1.442695
    %v371 = vpow.pop %v370
    %v372 = vmul.f32 %v358, 1.442695
    %v373 = vpow.pop %v372
    %v374 = vmul.f32 %v359, 1.442695
    %v375 = vpow.pop %v374
    %v376 = vsel %vm327, %v361, 0.0
    %377 = vadd.xlane.f32.xlu0 %v376
    %v378 = vpop.xlane.xlu0 %377
    %v379 = vsel %vm327, %v363, 0.0
    %380 = vadd.xlane.f32.xlu0 %v379
    %v381 = vpop.xlane.xlu0 %380
    %v382 = vsel %vm327, %v365, 0.0
    %383 = vadd.xlane.f32.xlu0 %v382
    %v384 = vpop.xlane.xlu0 %383
    %v385 = vsel %vm327, %v367, 0.0
    %386 = vadd.xlane.f32.xlu0 %v385
    %v387 = vpop.xlane.xlu0 %386
    %v388 = vsel %vm327, %v369, 0.0
    %389 = vadd.xlane.f32.xlu0 %v388
    %v390 = vpop.xlane.xlu0 %389
    %v391 = vsel %vm327, %v371, 0.0
    %392 = vadd.xlane.f32.xlu0 %v391
    %v393 = vpop.xlane.xlu0 %392
    %v394 = vsel %vm327, %v373, 0.0
    %395 = vadd.xlane.f32.xlu0 %v394
    %v396 = vpop.xlane.xlu0 %395
    %v397 = vsel %vm327, %v375, 0.0
    %398 = vadd.xlane.f32.xlu0 %v397
    %v399 = vpop.xlane.xlu0 %398
    %v400 = vrcp.pop %v378
    %v401 = vrcp.pop %v381
    %v402 = vrcp.pop %v384
    %v403 = vrcp.pop %v387
    %v404 = vrcp.pop %v390
    %v405 = vrcp.pop %v393
    %v406 = vrcp.pop %v396
    %v407 = vrcp.pop %v399
    %v408 = vmul.f32 %v361, %v400
    %v409 = vmul.f32 %v363, %v401
    %v410 = vmul.f32 %v365, %v402
    %v411 = vmul.f32 %v367, %v403
    %v412 = vmul.f32 %v369, %v404
    %v413 = vmul.f32 %v371, %v405
    %v414 = vmul.f32 %v373, %v406
    %v415 = vmul.f32 %v375, %v407
    %v416 = vpack.c.bf16 %v409, %v408
    %v417 = vpack.c.bf16 %v411, %v410
    %v418 = vpack.c.bf16 %v413, %v412
    %v419 = vpack.c.bf16 %v415, %v414
    %420 = vrot.lane.b32.xlu0 %v105, 32
    %v421 = vpop.permute.xlu0 %420
    %v424 = vsel %vm327, %v417, 0
    %426 = vmatprep.subr.bf16.mxu0 0
    %427 = vmatpush1.bf16.msra.mxu0 0
    %428 = vmatprep.subr.bf16.mxu0 0
    %429 = vmatpush1.bf16.msra.mxu0 0
    %430 = vmatprep.subr.bf16.mxu0 0
    %431 = vmatpush1.bf16.msra.mxu0 0
    %432 = vmatprep.subr.bf16.mxu0 0
    %433 = vmatpush1.bf16.msra.mxu0 0
    %434 = vmatprep.subr.bf16.mxu0 0
    %435 = vmatpush1.bf16.msra.mxu0 0
    %436 = vmatprep.subr.bf16.mxu0 0
    %437 = vmatpush1.bf16.msra.mxu0 0
    %438 = vmatprep.subr.bf16.mxu0 0
    %439 = vmatpush1.bf16.msra.mxu0 0
    %440 = vmatprep.subr.bf16.mxu0 0
    %441 = vmatpush1.bf16.msra.mxu0 %v421
    %442 = vmatprep.subr.bf16.mxu0 0
    %443 = vmatpush2.bf16.msra.mxu0 0
    %444 = vmatprep.subr.bf16.mxu0 0
    %445 = vmatpush2.bf16.msra.mxu0 0
    %446 = vmatprep.subr.bf16.mxu0 0
    %447 = vmatpush2.bf16.msra.mxu0 0
    %448 = vmatprep.subr.bf16.mxu0 0
    %449 = vmatpush2.bf16.msra.mxu0 0
    %450 = vmatprep.subr.bf16.mxu0 0
    %451 = vmatpush2.bf16.msra.mxu0 0
    %452 = vmatprep.subr.bf16.mxu0 0
    %453 = vmatpush2.bf16.msra.mxu0 0
    %454 = vmatprep.subr.bf16.mxu0 0
    %455 = vmatpush2.bf16.msra.mxu0 0
    %456 = vmatprep.subr.bf16.mxu0 0
    %457 = vmatpush2.bf16.msra.mxu0 0
    %458 = vmatprep.mubr.bf16.mxu0 0
    %459 = vmatmul.mubr.bf16.gmra.mxu0 %v424
    %v460 = vpop.f32.mrf.mxu0
    %v461 = vadd.f32 0.0, %v460
    %v462 = vpop.f32.mrf.mxu0
    %v463 = vpop.f32.mrf.mxu0
    %v464 = vadd.f32 0.0, %v463
    %v465 = vpop.f32.mrf.mxu0
    %466 = vdwg.mxu0
    %467 = vrot.lane.b32.xlu0 %v105, 64
    %v468 = vpop.permute.xlu0 %467
    %v471 = vsel %vm327, %v416, 0
    %473 = vmatprep.subr.bf16.mxu0 0
    %474 = vmatpush1.bf16.msra.mxu0 0
    %475 = vmatprep.subr.bf16.mxu0 0
    %476 = vmatpush1.bf16.msra.mxu0 0
    %477 = vmatprep.subr.bf16.mxu0 0
    %478 = vmatpush1.bf16.msra.mxu0 0
    %479 = vmatprep.subr.bf16.mxu0 0
    %480 = vmatpush1.bf16.msra.mxu0 0
    %481 = vmatprep.subr.bf16.mxu0 0
    %482 = vmatpush1.bf16.msra.mxu0 0
    %483 = vmatprep.subr.bf16.mxu0 0
    %484 = vmatpush1.bf16.msra.mxu0 0
    %485 = vmatprep.subr.bf16.mxu0 0
    %486 = vmatpush1.bf16.msra.mxu0 0
    %487 = vmatprep.subr.bf16.mxu0 0
    %488 = vmatpush1.bf16.msra.mxu0 %v468
    %489 = vmatprep.subr.bf16.mxu0 0
    %490 = vmatpush2.bf16.msra.mxu0 0
    %491 = vmatprep.subr.bf16.mxu0 0
    %492 = vmatpush2.bf16.msra.mxu0 0
    %493 = vmatprep.subr.bf16.mxu0 0
    %494 = vmatpush2.bf16.msra.mxu0 0
    %495 = vmatprep.subr.bf16.mxu0 0
    %496 = vmatpush2.bf16.msra.mxu0 0
    %497 = vmatprep.subr.bf16.mxu0 0
    %498 = vmatpush2.bf16.msra.mxu0 0
    %499 = vmatprep.subr.bf16.mxu0 0
    %500 = vmatpush2.bf16.msra.mxu0 0
    %501 = vmatprep.subr.bf16.mxu0 0
    %502 = vmatpush2.bf16.msra.mxu0 0
    %503 = vmatprep.subr.bf16.mxu0 0
    %504 = vmatpush2.bf16.msra.mxu0 0
    %505 = vmatprep.mubr.bf16.mxu0 0
    %506 = vmatmul.mubr.bf16.gmra.mxu0 %v471
    %v507 = vpop.f32.mrf.mxu0
    %v508 = vadd.f32 %v461, %v507
    %v509 = vpop.f32.mrf.mxu0
    %v510 = vpop.f32.mrf.mxu0
    %v511 = vadd.f32 %v464, %v510
    %v512 = vpop.f32.mrf.mxu0
    %513 = vdwg.mxu0
    %v515 = vsel %vm327, %v418, 0
    %517 = vmatprep.subr.bf16.mxu0 0
    %518 = vmatpush1.bf16.msra.mxu0 0
    %519 = vmatprep.subr.bf16.mxu0 0
    %520 = vmatpush1.bf16.msra.mxu0 0
    %521 = vmatprep.subr.bf16.mxu0 0
    %522 = vmatpush1.bf16.msra.mxu0 0
    %523 = vmatprep.subr.bf16.mxu0 0
    %524 = vmatpush1.bf16.msra.mxu0 0
    %525 = vmatprep.subr.bf16.mxu0 0
    %526 = vmatpush1.bf16.msra.mxu0 0
    %527 = vmatprep.subr.bf16.mxu0 0
    %528 = vmatpush1.bf16.msra.mxu0 0
    %529 = vmatprep.subr.bf16.mxu0 0
    %530 = vmatpush1.bf16.msra.mxu0 0
    %531 = vmatprep.subr.bf16.mxu0 0
    %532 = vmatpush1.bf16.msra.mxu0 %v106
    %533 = vmatprep.subr.bf16.mxu0 0
    %534 = vmatpush2.bf16.msra.mxu0 0
    %535 = vmatprep.subr.bf16.mxu0 0
    %536 = vmatpush2.bf16.msra.mxu0 0
    %537 = vmatprep.subr.bf16.mxu0 0
    %538 = vmatpush2.bf16.msra.mxu0 0
    %539 = vmatprep.subr.bf16.mxu0 0
    %540 = vmatpush2.bf16.msra.mxu0 0
    %541 = vmatprep.subr.bf16.mxu0 0
    %542 = vmatpush2.bf16.msra.mxu0 0
    %543 = vmatprep.subr.bf16.mxu0 0
    %544 = vmatpush2.bf16.msra.mxu0 0
    %545 = vmatprep.subr.bf16.mxu0 0
    %546 = vmatpush2.bf16.msra.mxu0 0
    %547 = vmatprep.subr.bf16.mxu0 0
    %548 = vmatpush2.bf16.msra.mxu0 0
    %549 = vmatprep.mubr.bf16.mxu0 0
    %550 = vmatmul.mubr.bf16.gmra.mxu0 %v515
    %v551 = vpop.f32.mrf.mxu0
    %v552 = vadd.f32 0.0, %v551
    %v553 = vpop.f32.mrf.mxu0
    %v554 = vpop.f32.mrf.mxu0
    %v555 = vadd.f32 0.0, %v554
    %v556 = vpop.f32.mrf.mxu0
    %557 = vdwg.mxu0
    %v558 = vadd.f32 %v508, %v552
    %v559 = vadd.f32 %v511, %v555
    %561 = vrot.lane.b32.xlu0 %v106, 96
    %v562 = vpop.permute.xlu0 %561
    %v565 = vsel %vm327, %v419, 0
    %567 = vmatprep.subr.bf16.mxu0 0
    %568 = vmatpush1.bf16.msra.mxu0 0
    %569 = vmatprep.subr.bf16.mxu0 0
    %570 = vmatpush1.bf16.msra.mxu0 0
    %571 = vmatprep.subr.bf16.mxu0 0
    %572 = vmatpush1.bf16.msra.mxu0 0
    %573 = vmatprep.subr.bf16.mxu0 0
    %574 = vmatpush1.bf16.msra.mxu0 0
    %575 = vmatprep.subr.bf16.mxu0 0
    %576 = vmatpush1.bf16.msra.mxu0 0
    %577 = vmatprep.subr.bf16.mxu0 0
    %578 = vmatpush1.bf16.msra.mxu0 0
    %579 = vmatprep.subr.bf16.mxu0 0
    %580 = vmatpush1.bf16.msra.mxu0 0
    %581 = vmatprep.subr.bf16.mxu0 0
    %582 = vmatpush1.bf16.msra.mxu0 %v562
    %583 = vmatprep.subr.bf16.mxu0 0
    %584 = vmatpush2.bf16.msra.mxu0 0
    %585 = vmatprep.subr.bf16.mxu0 0
    %586 = vmatpush2.bf16.msra.mxu0 0
    %587 = vmatprep.subr.bf16.mxu0 0
    %588 = vmatpush2.bf16.msra.mxu0 0
    %589 = vmatprep.subr.bf16.mxu0 0
    %590 = vmatpush2.bf16.msra.mxu0 0
    %591 = vmatprep.subr.bf16.mxu0 0
    %592 = vmatpush2.bf16.msra.mxu0 0
    %593 = vmatprep.subr.bf16.mxu0 0
    %594 = vmatpush2.bf16.msra.mxu0 0
    %595 = vmatprep.subr.bf16.mxu0 0
    %596 = vmatpush2.bf16.msra.mxu0 0
    %597 = vmatprep.subr.bf16.mxu0 0
    %598 = vmatpush2.bf16.msra.mxu0 0
    %599 = vmatprep.mubr.bf16.mxu0 0
    %600 = vmatmul.mubr.bf16.gmra.mxu0 %v565
    %v601 = vpop.f32.mrf.mxu0
    %v602 = vadd.f32 0.0, %v601
    %v603 = vpop.f32.mrf.mxu0
    %v604 = vpop.f32.mrf.mxu0
    %v605 = vadd.f32 0.0, %v604
    %v606 = vpop.f32.mrf.mxu0
    %607 = vdwg.mxu0
    %v608 = vadd.f32 %v558, %v602
    %v609 = vadd.f32 %v559, %v605
    %v610 = vld [vmem:[%s2 + $0x1] ss:$0 sm:$0xff]
    %v611 = vadd.f32 %v608, %v610
    %v612 = vadd.f32 %v609, %v610
    %v613 = vadd.f32 %v19, %v611
    %v614 = vadd.f32 %v20, %v612
    %v615 = vld [vmem:[%s2 + $0x4] ss:$0 sm:$0xff]
    %v616 = vld [vmem:[%s2 + $0x5] ss:$0 sm:$0xff]
    %v617 = vsel %vm58, %v613, 0.0
    %618 = vadd.xlane.f32.xlu0 %v617
    %v619 = vpop.xlane.xlu0 %618
    %v620 = vsel %vm58, %v614, 0.0
    %621 = vadd.xlane.f32.xlu0 %v620
    %v622 = vpop.xlane.xlu0 %621
    %v623 = vrcp.pop 32.0
    %v624 = vmul.f32 %v619, %v623
    %v625 = vmul.f32 %v622, %v623
    %v626 = vsub.f32 %v613, %v624
    %v627 = vsub.f32 %v614, %v625
    %v628 = vmul.f32 %v626, %v626
    %v629 = vmul.f32 %v627, %v627
    %v630 = vsel %vm58, %v628, 0.0
    %631 = vadd.xlane.f32.xlu0 %v630
    %v632 = vpop.xlane.xlu0 %631
    %v633 = vsel %vm58, %v629, 0.0
    %634 = vadd.xlane.f32.xlu0 %v633
    %v635 = vpop.xlane.xlu0 %634
    %v636 = vmul.f32 %v632, %v623
    %v637 = vmul.f32 %v635, %v623
    %v638 = vadd.f32 %v636, 1e-05
    %v639 = vadd.f32 %v637, 1e-05
    %v640 = vrsqrt.pop %v638
    %v641 = vrsqrt.pop %v639
    %v642 = vmul.f32 %v626, %v640
    %v643 = vmul.f32 %v627, %v641
    %v644 = vmul.f32 %v642, %v615
    %v645 = vmul.f32 %v643, %v615
    %v646 = vadd.f32 %v644, %v616
    %v647 = vadd.f32 %v645, %v616
    %v648 = vld [vmem:[%s1 + $0x20] sm:$0xf]
    %v649 = vld [vmem:[%s1 + $0x28] sm:$0xf]
    %v650 = vld [vmem:[%s1 + $0x30] sm:$0xf]
    %v651 = vld [vmem:[%s1 + $0x38] sm:$0xf]
    %v652 = vld [vmem:[%s1 + $0x40] sm:$0xf]
    %v653 = vld [vmem:[%s1 + $0x48] sm:$0xf]
    %v654 = vld [vmem:[%s1 + $0x50] sm:$0xf]
    %v655 = vld [vmem:[%s1 + $0x58] sm:$0xf]
    %v656 = vld [vmem:[%s1 + $0x60] sm:$0xf]
    %v657 = vld [vmem:[%s1 + $0x68] sm:$0xf]
    %v658 = vld [vmem:[%s1 + $0x70] sm:$0xf]
    %v659 = vld [vmem:[%s1 + $0x78] sm:$0xf]
    %v660 = vpack.c.bf16 %v647, %v646
    %v661 = vld [vmem:[%s2 + $0x2] ss:$0 sm:$0xff]
    %v666 = vunpack.c.l.b16 %v648
    %v667 = vunpack.c.l.b16 %v649
    %v668 = vunpack.c.l.b16 %v650
    %v669 = vunpack.c.l.b16 %v651
    %v670 = vpack.c.b16 %v667, %v666
    %v671 = vpack.c.b16 %v669, %v668
    %v675 = vsel %vm58, %v660, 0
    %677 = vmatprep.subr.bf16.mxu0 0
    %678 = vmatpush1.bf16.msra.mxu0 0
    %679 = vmatprep.subr.bf16.mxu0 0
    %680 = vmatpush1.bf16.msra.mxu0 0
    %681 = vmatprep.subr.bf16.mxu0 0
    %682 = vmatpush1.bf16.msra.mxu0 0
    %683 = vmatprep.subr.bf16.mxu0 0
    %684 = vmatpush1.bf16.msra.mxu0 0
    %685 = vmatprep.subr.bf16.mxu0 0
    %686 = vmatpush1.bf16.msra.mxu0 0
    %687 = vmatprep.subr.bf16.mxu0 0
    %688 = vmatpush1.bf16.msra.mxu0 0
    %689 = vmatprep.subr.bf16.mxu0 0
    %690 = vmatpush1.bf16.msra.mxu0 %v671
    %691 = vmatprep.subr.bf16.mxu0 0
    %692 = vmatpush1.bf16.msra.mxu0 %v670
    %693 = vmatprep.subr.bf16.mxu0 0
    %694 = vmatpush2.bf16.msra.mxu0 0
    %695 = vmatprep.subr.bf16.mxu0 0
    %696 = vmatpush2.bf16.msra.mxu0 0
    %697 = vmatprep.subr.bf16.mxu0 0
    %698 = vmatpush2.bf16.msra.mxu0 0
    %699 = vmatprep.subr.bf16.mxu0 0
    %700 = vmatpush2.bf16.msra.mxu0 0
    %701 = vmatprep.subr.bf16.mxu0 0
    %702 = vmatpush2.bf16.msra.mxu0 0
    %703 = vmatprep.subr.bf16.mxu0 0
    %704 = vmatpush2.bf16.msra.mxu0 0
    %705 = vmatprep.subr.bf16.mxu0 0
    %706 = vmatpush2.bf16.msra.mxu0 0
    %707 = vmatprep.subr.bf16.mxu0 0
    %708 = vmatpush2.bf16.msra.mxu0 0
    %709 = vmatprep.mubr.bf16.mxu0 0
    %710 = vmatmul.mubr.bf16.gmra.mxu0 %v675
    %v711 = vpop.f32.mrf.mxu0
    %v712 = vadd.f32 %v661, %v711
    %v713 = vpop.f32.mrf.mxu0
    %v714 = vpop.f32.mrf.mxu0
    %v715 = vadd.f32 %v661, %v714
    %v716 = vpop.f32.mrf.mxu0
    %717 = vdwg.mxu0
    %v718 = vmax.f32 %v712, 0.0
    %v719 = vmax.f32 %v715, 0.0
    %v720 = vpack.c.bf16 %v719, %v718
    %v721 = vld [vmem:[%s2 + $0x3] ss:$0 sm:$0xff]
    %v730 = vunpack.c.l.b16 %v652
    %v731 = vunpack.c.l.b16 %v653
    %v732 = vunpack.c.l.b16 %v654
    %v733 = vunpack.c.l.b16 %v655
    %v734 = vunpack.c.l.b16 %v656
    %v735 = vunpack.c.l.b16 %v657
    %v736 = vunpack.c.l.b16 %v658
    %v737 = vunpack.c.l.b16 %v659
    %v738 = vpack.c.b16 %v731, %v730
    %v739 = vpack.c.b16 %v733, %v732
    %v740 = vpack.c.b16 %v735, %v734
    %v741 = vpack.c.b16 %v737, %v736
    %vm746 = vcmask 523264
    %v748 = vsel %vm746, %v720, 0
    %750 = vmatprep.subr.bf16.mxu0 0
    %751 = vmatpush1.bf16.msra.mxu0 0
    %752 = vmatprep.subr.bf16.mxu0 0
    %753 = vmatpush1.bf16.msra.mxu0 0
    %754 = vmatprep.subr.bf16.mxu0 0
    %755 = vmatpush1.bf16.msra.mxu0 0
    %756 = vmatprep.subr.bf16.mxu0 0
    %757 = vmatpush1.bf16.msra.mxu0 0
    %758 = vmatprep.subr.bf16.mxu0 0
    %759 = vmatpush1.bf16.msra.mxu0 %v741
    %760 = vmatprep.subr.bf16.mxu0 0
    %761 = vmatpush1.bf16.msra.mxu0 %v740
    %762 = vmatprep.subr.bf16.mxu0 0
    %763 = vmatpush1.bf16.msra.mxu0 %v739
    %764 = vmatprep.subr.bf16.mxu0 0
    %765 = vmatpush1.bf16.msra.mxu0 %v738
    %766 = vmatprep.subr.bf16.mxu0 0
    %767 = vmatpush2.bf16.msra.mxu0 0
    %768 = vmatprep.subr.bf16.mxu0 0
    %769 = vmatpush2.bf16.msra.mxu0 0
    %770 = vmatprep.subr.bf16.mxu0 0
    %771 = vmatpush2.bf16.msra.mxu0 0
    %772 = vmatprep.subr.bf16.mxu0 0
    %773 = vmatpush2.bf16.msra.mxu0 0
    %774 = vmatprep.subr.bf16.mxu0 0
    %775 = vmatpush2.bf16.msra.mxu0 0
    %776 = vmatprep.subr.bf16.mxu0 0
    %777 = vmatpush2.bf16.msra.mxu0 0
    %778 = vmatprep.subr.bf16.mxu0 0
    %779 = vmatpush2.bf16.msra.mxu0 0
    %780 = vmatprep.subr.bf16.mxu0 0
    %781 = vmatpush2.bf16.msra.mxu0 0
    %782 = vmatprep.mubr.bf16.mxu0 0
    %783 = vmatmul.mubr.bf16.gmra.mxu0 %v748
    %v784 = vpop.f32.mrf.mxu0
    %v785 = vadd.f32 %v721, %v784
    %v786 = vpop.f32.mrf.mxu0
    %v787 = vpop.f32.mrf.mxu0
    %v788 = vadd.f32 %v721, %v787
    %v789 = vpop.f32.mrf.mxu0
    %790 = vdwg.mxu0
    %v791 = vadd.f32 %v646, %v785
    %v792 = vadd.f32 %v647, %v788
    %v793 = vld [vmem:[%s2 + $0x6] ss:$0 sm:$0xff]
    %v794 = vld [vmem:[%s2 + $0x7] ss:$0 sm:$0xff]
    %v795 = vsel %vm58, %v791, 0.0
    %796 = vadd.xlane.f32.xlu0 %v795
    %v797 = vpop.xlane.xlu0 %796
    %v798 = vsel %vm58, %v792, 0.0
    %799 = vadd.xlane.f32.xlu0 %v798
    %v800 = vpop.xlane.xlu0 %799
    %v801 = vmul.f32 %v797, %v623
    %v802 = vmul.f32 %v800, %v623
    %v803 = vsub.f32 %v791, %v801
    %v804 = vsub.f32 %v792, %v802
    %v805 = vmul.f32 %v803, %v803
    %v806 = vmul.f32 %v804, %v804
    %v807 = vsel %vm58, %v805, 0.0
    %808 = vadd.xlane.f32.xlu0 %v807
    %v809 = vpop.xlane.xlu0 %808
    %v810 = vsel %vm58, %v806, 0.0
    %811 = vadd.xlane.f32.xlu0 %v810
    %v812 = vpop.xlane.xlu0 %811
    %v813 = vmul.f32 %v809, %v623
    %v814 = vmul.f32 %v812, %v623
    %v815 = vadd.f32 %v813, 1e-05
    %v816 = vadd.f32 %v814, 1e-05
    %v817 = vrsqrt.pop %v815
    %v818 = vrsqrt.pop %v816
    %v819 = vmul.f32 %v803, %v817
    %v820 = vmul.f32 %v804, %v818
    %v821 = vmul.f32 %v819, %v793
    %v822 = vmul.f32 %v820, %v793
    %v823 = vadd.f32 %v821, %v794
    %v824 = vadd.f32 %v822, %v794
    %825 = vst.msk [vmem:[#allocation2] sm:$0xff] %vm58, %v823
    %826 = vst.msk [vmem:[#allocation2 + $0x8] sm:$0xff] %vm58, %v824
    // Predicated region
    $region18: #{tpu_custom_call.1} parent=1 // pred_check
      _
    $region19: #{tpu_custom_call.1} parent=1 // pred_check_branch
      %828 = sbr.rel (0) target = $region21
    $region20: #{tpu_custom_call.1} parent=1 // pred_region
      %s830 = ssub.s32 256, 256
      %831 = vsyncadd [#allocation3], %s830
      %s832 = sshll.u32 [#allocation2], 4
      %s833 = int_to_ptr.vmem [resolvable:$true] %s832
      %838 = dma.vmem_to_hbm [thread:$0]  %s833, 256, %s4, [#allocation3], 128, 128, 8
    $region21: #{tpu_custom_call.1} parent=1 // pred_fallthru
      _
    // Predicated region
    $region22: #{tpu_custom_call.1} parent=1 // pred_check
      _
    $region23: #{tpu_custom_call.1} parent=1 // pred_check_branch
      %840 = sbr.rel (0) target = $region25
    $region24: #{tpu_custom_call.1} parent=1 // pred_region
      %841 = dma.done [#allocation3], 256
    $region25: #{tpu_custom_call.1} parent=1 // pred_fallthru
      _
    %842 = vsyncpa [#allocation3], 1

</llo_original>
